<compile_context>
chip_gen: v7x
topology: tpu7x:2x2x1
jax: 0.10.0
libtpu: 0.0.40
codegen_flags: <defaults>
</compile_context>

<pallas_src>
import functools

import jax
import jax.numpy as jnp
from jax.experimental import pallas as pl
from jax.experimental.pallas import tpu as pltpu


def _round_up(x, m):
    return ((x + m - 1) // m) * m


def _tpu_vmem_capacity_bytes():
    """Physical VMEM per TensorCore; falls back to 128 MiB if the query fails."""
    try:
        return int(pltpu.get_tpu_info().vmem_capacity_bytes)
    except Exception:
        return 128 * 1024 * 1024


def _make_userconv_kernel(tk_eff, d_news, news_resident):
    """Build the kernel body; tk_eff / d_news / residency are baked in statically."""

    def kernel(adjT_ref, newsa_ref, users_ref,
               w1u_ref, w1n_ref, b1_ref, w2_ref, b2_ref,
               out_ref, acc_ref):
        k = pl.program_id(1)

        # zero the [TU, Dn1p] accumulator at the start of the news reduction
        @pl.when(k == 0)
        def _():
            acc_ref[...] = jnp.zeros_like(acc_ref)

        if news_resident:
            # news|1 is fully resident in VMEM; slice the current k chunk
            start = pl.multiple_of(k * tk_eff, 128)
            news_blk = newsa_ref[pl.ds(start, tk_eff), :]
        else:
            news_blk = newsa_ref[...]

        # aggregation + degree in one MXU pass:
        #   [TU, TK](bf16) @ [TK, Dn1p](bf16) -> f32; column d_news is the degree
        acc_ref[...] += jnp.dot(adjT_ref[...], news_blk,
                                preferred_element_type=jnp.float32)

        # epilogue: normalize, fused concat-MLP, lane-dense store
        @pl.when(k == pl.num_programs(1) - 1)
        def _():
            acc = acc_ref[...]                              # [TU, Dn1p] f32
            deg = acc[:, d_news:d_news + 1]                 # [TU, 1]
            # exact divide (runs once per user tile; padded columns of W1n are
            # zero, so dividing the deg/pad columns too is harmless)
            agr = acc * (1.0 / (deg + 1e-8))                # [TU, Dn1p]

            # lin1(concat([users, agr])) == users @ W1u + agr @ W1n + b1
            h = (jnp.dot(users_ref[...], w1u_ref[...],
                         preferred_element_type=jnp.float32)
                 + jnp.dot(agr.astype(jnp.bfloat16), w1n_ref[...],
                           preferred_element_type=jnp.float32)
                 + b1_ref[...])                             # [TU, H] f32
            h = jnp.tanh(h)

            out_ref[...] = (jnp.dot(h.astype(jnp.bfloat16), w2_ref[...],
                                    preferred_element_type=jnp.float32)
                            + b2_ref[...])                  # [TU, Dout_pad]

    return kernel


@functools.partial(jax.jit, static_argnames=("tu", "tk"))
def userconv_forward(adj, news_feats, user_feats, w1, b1, w2, b2,
                     *, tu=None, tk=None):
    """adj: [Nn, Nu] 0/1; news_feats: [Nn, Dn]; user_feats: [Nu, Du];
    w1: [H, Du+Dn]; b1: [H]; w2: [Dout, H]; b2: [Dout]."""
    num_news, num_users = adj.shape
    d_news = news_feats.shape[1]
    d_user = user_feats.shape[1]
    hidden = w1.shape[0]
    d_out = w2.shape[0]

    dn1 = d_news + 1                         # news features + ones column
    dn1_pad = _round_up(dn1, 128)            # lane-dense accumulator
    d_out_pad = _round_up(d_out, 128)        # lane-dense output store

    # ---- generation-aware tile / VMEM budget --------------------------------
    vmem_cap = _tpu_vmem_capacity_bytes()
    small_vmem = vmem_cap <= 80 * 1024 * 1024        # v7x-class: 64 MiB / TC
    vmem_limit = (46 if small_vmem else 96) * 1024 * 1024
    dual_core = small_vmem                           # v7x has 2 TCs per chip
    if tu is None:
        tu = 1024 if small_vmem else 2048
    if tk is None:
        tk = 4096

    # users-axis tile (sublane axis: multiple of 8)
    nu_aligned = _round_up(num_users, 8)
    tu_eff = max(8, min(tu, nu_aligned))
    if dual_core and nu_aligned >= 16:
        # keep >= 2 "parallel" i-tiles so megacore shards users across both TCs
        tu_eff = min(tu_eff, _round_up((nu_aligned + 1) // 2, 8))
    # news-axis tile (lane axis of adjT: multiple of 128)
    tk_eff = max(128, min(tk, _round_up(num_news, 128)))

    w_bytes = ((d_user * hidden + dn1_pad * hidden + hidden * d_out_pad) * 2
               + (hidden + d_out_pad) * 4)

    def est_bytes(tu_, tk_, news_resident_):
        nn_pad_ = _round_up(num_news, tk_)
        b = 2 * tu_ * tk_ * 2                        # adjT bf16, double-buffered
        b += 2 * tu_ * d_user * 2                    # users bf16
        b += 2 * tu_ * d_out_pad * 4                 # out f32
        b += tu_ * dn1_pad * 4                       # acc scratch f32
        b += (nn_pad_ * dn1_pad * 2 if news_resident_
              else 2 * tk_ * dn1_pad * 2)            # news|1 bf16
        return b + w_bytes

    budget = int(0.88 * vmem_limit)
    # shrink tiles only if a very large problem would overflow the budget
    while est_bytes(tu_eff, tk_eff, False) > budget and tk_eff > 128:
        tk_eff = max(128, _round_up(tk_eff // 2, 128))
    while est_bytes(tu_eff, tk_eff, False) > budget and tu_eff > 8:
        tu_eff = max(8, _round_up(tu_eff // 2, 8))
    news_resident = est_bytes(tu_eff, tk_eff, True) <= budget

    nn_pad = _round_up(num_news, tk_eff)
    nu_pad = _round_up(num_users, tu_eff)

    # ---- input prep: single fused pass per array (wrapper is jitted) --------
    adj_t = jnp.pad(adj.astype(jnp.bfloat16).T,
                    ((0, nu_pad - num_users), (0, nn_pad - num_news)))
    news_aug = jnp.pad(
        jnp.concatenate([news_feats.astype(jnp.bfloat16),
                         jnp.ones((num_news, 1), jnp.bfloat16)], axis=1),
        ((0, nn_pad - num_news), (0, dn1_pad - dn1)))
    users_p = jnp.pad(user_feats.astype(jnp.bfloat16),
                      ((0, nu_pad - num_users), (0, 0)))

    # split lin1 weight along the concat order [users | agr]; pre-transpose so
    # every in-kernel matmul is a plain (M,K)@(K,N); pad news half / W2 lanes.
    w1u_t = w1[:, :d_user].T.astype(jnp.bfloat16)                 # [Du, H]
    w1n_t = jnp.pad(w1[:, d_user:].T.astype(jnp.bfloat16),
                    ((0, dn1_pad - d_news), (0, 0)))              # [Dn1p, H]
    b1_2d = b1.reshape(1, hidden).astype(jnp.float32)             # [1, H]
    w2_t = jnp.pad(w2.T.astype(jnp.bfloat16),
                   ((0, 0), (0, d_out_pad - d_out)))              # [H, Doutp]
    b2_2d = jnp.pad(b2.reshape(1, d_out).astype(jnp.float32),
                    ((0, 0), (0, d_out_pad - d_out)))             # [1, Doutp]

    if news_resident:
        news_spec = pl.BlockSpec((nn_pad, dn1_pad), lambda i, k: (0, 0))
    else:
        news_spec = pl.BlockSpec((tk_eff, dn1_pad), lambda i, k: (k, 0))

    grid = (nu_pad // tu_eff, nn_pad // tk_eff)
    kernel = _make_userconv_kernel(tk_eff, d_news, news_resident)

    out = pl.pallas_call(
        kernel,
        out_shape=jax.ShapeDtypeStruct((nu_pad, d_out_pad), jnp.float32),
        grid_spec=pltpu.PrefetchScalarGridSpec(
            num_scalar_prefetch=0,
            grid=grid,
            in_specs=[
                pl.BlockSpec((tu_eff, tk_eff), lambda i, k: (i, k)),     # adj^T
                news_spec,                                               # news|1
                pl.BlockSpec((tu_eff, d_user), lambda i, k: (i, 0)),     # users
                pl.BlockSpec((d_user, hidden), lambda i, k: (0, 0)),     # W1 user half
                pl.BlockSpec((dn1_pad, hidden), lambda i, k: (0, 0)),    # W1 news half
                pl.BlockSpec((1, hidden), lambda i, k: (0, 0)),          # b1
                pl.BlockSpec((hidden, d_out_pad), lambda i, k: (0, 0)),  # W2 (padded)
                pl.BlockSpec((1, d_out_pad), lambda i, k: (0, 0)),       # b2 (padded)
            ],
            out_specs=pl.BlockSpec((tu_eff, d_out_pad), lambda i, k: (i, 0)),
            scratch_shapes=[pltpu.VMEM((tu_eff, dn1_pad), jnp.float32)],
        ),
        compiler_params=pltpu.CompilerParams(
            dimension_semantics=("parallel", "arbitrary"),
            vmem_limit_bytes=vmem_limit,
        ),
    )(adj_t, news_aug, users_p, w1u_t, w1n_t, b1_2d, w2_t, b2_2d)

    return out[:num_users, :d_out]


def reference(adj, news, users, w1, b1, w2, b2):
    deg = adj.sum(axis=0)
    agr = adj.T @ news
    agr = agr / (deg[:, None] + 1e-8)
    cat = jnp.concatenate([users, agr], axis=1)
    h = jnp.tanh(cat @ w1.T + b1)
    return h @ w2.T + b2


if __name__ == "__main__":
    key = jax.random.PRNGKey(0)
    k_adj, k_news, k_users, kw1, kb1, kw2, kb2 = jax.random.split(key, 7)

    num_news, num_users = 48, 32
    d_news, d_user = 16, 16
    in_channels = d_user + d_news          # 32
    hidden_channels = 32
    out_channels = 8

    adj = jax.random.bernoulli(k_adj, p=0.3,
                               shape=(num_news, num_users)).astype(jnp.float32)
    news_feats = jax.random.normal(k_news, (num_news, d_news), jnp.float32)
    user_feats = jax.random.normal(k_users, (num_users, d_user), jnp.float32)

    # nn.Linear default init: U(-1/sqrt(fan_in), 1/sqrt(fan_in))
    bound1 = 1.0 / jnp.sqrt(in_channels)
    w1 = jax.random.uniform(kw1, (hidden_channels, in_channels), jnp.float32,
                            -bound1, bound1)
    b1 = jax.random.uniform(kb1, (hidden_channels,), jnp.float32, -bound1, bound1)
    bound2 = 1.0 / jnp.sqrt(hidden_channels)
    w2 = jax.random.uniform(kw2, (out_channels, hidden_channels), jnp.float32,
                            -bound2, bound2)
    b2 = jax.random.uniform(kb2, (out_channels,), jnp.float32, -bound2, bound2)

    out = userconv_forward(adj, news_feats, user_feats, w1, b1, w2, b2)
    out = jax.block_until_ready(out)

    ref = reference(adj, news_feats, user_feats, w1, b1, w2, b2)
    assert out.shape == (num_users, out_channels)
    # bf16 aggregation / MLP operands (f32 accumulate) vs the all-f32 reference
    assert jnp.allclose(out, ref, rtol=5e-2, atol=5e-2), "mismatch vs reference"

    print("KERNEL_OK")
</pallas_src>

<mosaic_0001>
module attributes {stable_mosaic.version = 11 : i64} {
  func.func @kernel(%arg0: i32, %arg1: i32, %arg2: memref<32x128xbf16, #tpu.memory_space<vmem>>, %arg3: memref<128x128xbf16, #tpu.memory_space<vmem>>, %arg4: memref<32x16xbf16, #tpu.memory_space<vmem>>, %arg5: memref<16x32xbf16, #tpu.memory_space<vmem>>, %arg6: memref<128x32xbf16, #tpu.memory_space<vmem>>, %arg7: memref<1x32xf32, #tpu.memory_space<vmem>>, %arg8: memref<32x128xbf16, #tpu.memory_space<vmem>>, %arg9: memref<1x128xf32, #tpu.memory_space<vmem>>, %arg10: memref<32x128xf32, #tpu.memory_space<vmem>>, %arg11: memref<32x128xf32, #tpu.memory_space<vmem>>) attributes {dimension_semantics = [#tpu.dimension_semantics<parallel>, #tpu.dimension_semantics<arbitrary>], iteration_bounds = array<i64: 1, 1>, scalar_prefetch = 0 : i64, scratch_operands = 1 : i64, tpu.core_type = #tpu.core_type<tc>, window_params = [{transform_indices = @transform_0, window_bounds = array<i64: 32, 128>}, {pipeline_mode = #tpu.pipeline_mode<synchronous>, transform_indices = @transform_1, window_bounds = array<i64: 128, 128>}, {transform_indices = @transform_2, window_bounds = array<i64: 32, 16>}, {pipeline_mode = #tpu.pipeline_mode<synchronous>, transform_indices = @transform_3, window_bounds = array<i64: 16, 32>}, {pipeline_mode = #tpu.pipeline_mode<synchronous>, transform_indices = @transform_4, window_bounds = array<i64: 128, 32>}, {pipeline_mode = #tpu.pipeline_mode<synchronous>, transform_indices = @transform_5, window_bounds = array<i64: 1, 32>}, {pipeline_mode = #tpu.pipeline_mode<synchronous>, transform_indices = @transform_6, window_bounds = array<i64: 32, 128>}, {pipeline_mode = #tpu.pipeline_mode<synchronous>, transform_indices = @transform_7, window_bounds = array<i64: 1, 128>}, {transform_indices = @transform_8, window_bounds = array<i64: 32, 128>}]} {
    %c0_i32 = arith.constant 0 : i32
    %0 = arith.cmpi eq, %arg1, %c0_i32 : i32
    %1 = arith.extui %0 : i1 to i32
    %c0_i32_0 = arith.constant 0 : i32
    %2 = arith.cmpi ne, %1, %c0_i32_0 : i32
    scf.if %2 {
      %cst_9 = arith.constant 0.000000e+00 : f32
      %15 = vector.broadcast %cst_9 : f32 to vector<32x128xf32>
      %c0_10 = arith.constant 0 : index
      %c0_11 = arith.constant 0 : index
      %16 = vector.load %arg11[%c0_10, %c0_11] : memref<32x128xf32, #tpu.memory_space<vmem>>, vector<32x128xf32>
      tpu.vector_store %arg11[%c0_10, %c0_11], %15 {strides = array<i32>} : memref<32x128xf32, #tpu.memory_space<vmem>>, vector<32x128xf32>,
    } else {
    }
    %c128_i32 = arith.constant 128 : i32
    %3 = arith.muli %arg1, %c128_i32 : i32
    %4 = tpu.assume_multiple %3, 128 : i32
    %5 = arith.index_cast %4 : i32 to index
    %c0 = arith.constant 0 : index
    %6 = vector.load %arg3[%5, %c0] : memref<128x128xbf16, #tpu.memory_space<vmem>>, vector<128x128xbf16>
    %c0_1 = arith.constant 0 : index
    %c0_2 = arith.constant 0 : index
    %7 = vector.load %arg11[%c0_1, %c0_2] : memref<32x128xf32, #tpu.memory_space<vmem>>, vector<32x128xf32>
    %c0_3 = arith.constant 0 : index
    %c0_4 = arith.constant 0 : index
    %8 = vector.load %arg2[%c0_3, %c0_4] : memref<32x128xbf16, #tpu.memory_space<vmem>>, vector<32x128xbf16>
    %cst = arith.constant dense<0.000000e+00> : vector<32x128xf32>
    %9 = tpu.matmul %8, %6, %cst {dimension_numbers = #tpu.dot_dimension_numbers<[1], [0], [0], [1], [0, 0, 1, 1], [], []>} : vector<32x128xbf16>, vector<128x128xbf16>, vector<32x128xf32> -> vector<32x128xf32>
    %10 = arith.addf %7, %9 : vector<32x128xf32>
    %c0_5 = arith.constant 0 : index
    %c0_6 = arith.constant 0 : index
    %11 = vector.load %arg11[%c0_5, %c0_6] : memref<32x128xf32, #tpu.memory_space<vmem>>, vector<32x128xf32>
    tpu.vector_store %arg11[%c0_5, %c0_6], %10 {strides = array<i32>} : memref<32x128xf32, #tpu.memory_space<vmem>>, vector<32x128xf32>,
    %c0_i32_7 = arith.constant 0 : i32
    %12 = arith.cmpi eq, %arg1, %c0_i32_7 : i32
    %13 = arith.extui %12 : i1 to i32
    %c0_i32_8 = arith.constant 0 : i32
    %14 = arith.cmpi ne, %13, %c0_i32_8 : i32
    scf.if %14 {
      %c0_9 = arith.constant 0 : index
      %c0_10 = arith.constant 0 : index
      %15 = vector.load %arg11[%c0_9, %c0_10] : memref<32x128xf32, #tpu.memory_space<vmem>>, vector<32x128xf32>
      %16 = vector.extract_strided_slice %15 {offsets = [0, 16], sizes = [32, 1], strides = [1, 1]} : vector<32x128xf32> to vector<32x1xf32>
      %cst_11 = arith.constant 9.99999993E-9 : f32
      %17 = vector.broadcast %cst_11 : f32 to vector<32x1xf32>
      %18 = arith.addf %16, %17 : vector<32x1xf32>
      %cst_12 = arith.constant 1.000000e+00 : f32
      %19 = vector.broadcast %cst_12 : f32 to vector<32x1xf32>
      %20 = arith.divf %19, %18 : vector<32x1xf32>
      %21 = vector.broadcast %20 : vector<32x1xf32> to vector<32x128xf32>
      %22 = arith.mulf %15, %21 : vector<32x128xf32>
      %c0_13 = arith.constant 0 : index
      %c0_14 = arith.constant 0 : index
      %23 = vector.load %arg4[%c0_13, %c0_14] : memref<32x16xbf16, #tpu.memory_space<vmem>>, vector<32x16xbf16>
      %c0_15 = arith.constant 0 : index
      %c0_16 = arith.constant 0 : index
      %24 = vector.load %arg5[%c0_15, %c0_16] : memref<16x32xbf16, #tpu.memory_space<vmem>>, vector<16x32xbf16>
      %cst_17 = arith.constant dense<0.000000e+00> : vector<32x32xf32>
      %25 = tpu.matmul %23, %24, %cst_17 {dimension_numbers = #tpu.dot_dimension_numbers<[1], [0], [0], [1], [0, 0, 1, 1], [], []>} : vector<32x16xbf16>, vector<16x32xbf16>, vector<32x32xf32> -> vector<32x32xf32>
      %26 = arith.truncf %22 : vector<32x128xf32> to vector<32x128xbf16>
      %c0_18 = arith.constant 0 : index
      %c0_19 = arith.constant 0 : index
      %27 = vector.load %arg6[%c0_18, %c0_19] : memref<128x32xbf16, #tpu.memory_space<vmem>>, vector<128x32xbf16>
      %cst_20 = arith.constant dense<0.000000e+00> : vector<32x32xf32>
      %28 = tpu.matmul %26, %27, %cst_20 {dimension_numbers = #tpu.dot_dimension_numbers<[1], [0], [0], [1], [0, 0, 1, 1], [], []>} : vector<32x128xbf16>, vector<128x32xbf16>, vector<32x32xf32> -> vector<32x32xf32>
      %29 = arith.addf %25, %28 : vector<32x32xf32>
      %c0_21 = arith.constant 0 : index
      %c0_22 = arith.constant 0 : index
      %30 = vector.load %arg7[%c0_21, %c0_22] : memref<1x32xf32, #tpu.memory_space<vmem>>, vector<1x32xf32>
      %31 = vector.broadcast %30 : vector<1x32xf32> to vector<32x32xf32>
      %32 = arith.addf %29, %31 : vector<32x32xf32>
      %33 = math.tanh %32 : vector<32x32xf32>
      %34 = arith.truncf %33 : vector<32x32xf32> to vector<32x32xbf16>
      %c0_23 = arith.constant 0 : index
      %c0_24 = arith.constant 0 : index
      %35 = vector.load %arg8[%c0_23, %c0_24] : memref<32x128xbf16, #tpu.memory_space<vmem>>, vector<32x128xbf16>
      %cst_25 = arith.constant dense<0.000000e+00> : vector<32x128xf32>
      %36 = tpu.matmul %34, %35, %cst_25 {dimension_numbers = #tpu.dot_dimension_numbers<[1], [0], [0], [1], [0, 0, 1, 1], [], []>} : vector<32x32xbf16>, vector<32x128xbf16>, vector<32x128xf32> -> vector<32x128xf32>
      %c0_26 = arith.constant 0 : index
      %c0_27 = arith.constant 0 : index
      %37 = vector.load %arg9[%c0_26, %c0_27] : memref<1x128xf32, #tpu.memory_space<vmem>>, vector<1x128xf32>
      %38 = vector.broadcast %37 : vector<1x128xf32> to vector<32x128xf32>
      %39 = arith.addf %36, %38 : vector<32x128xf32>
      %c0_28 = arith.constant 0 : index
      %c0_29 = arith.constant 0 : index
      %40 = vector.load %arg10[%c0_28, %c0_29] : memref<32x128xf32, #tpu.memory_space<vmem>>, vector<32x128xf32>
      tpu.vector_store %arg10[%c0_28, %c0_29], %39 {strides = array<i32>} : memref<32x128xf32, #tpu.memory_space<vmem>>, vector<32x128xf32>,
    } else {
    }
    return
  }
  func.func @transform_0(%arg0: i32, %arg1: i32) -> (i32, i32) {
    %c0_i32 = arith.constant 0 : i32
    return %arg0, %arg1 : i32, i32
  }
  func.func @transform_1(%arg0: i32, %arg1: i32) -> (i32, i32) {
    %c0_i32 = arith.constant 0 : i32
    %c0_i32_0 = arith.constant 0 : i32
    %c0_i32_1 = arith.constant 0 : i32
    return %c0_i32, %c0_i32_0 : i32, i32
  }
  func.func @transform_2(%arg0: i32, %arg1: i32) -> (i32, i32) {
    %c0_i32 = arith.constant 0 : i32
    %c0_i32_0 = arith.constant 0 : i32
    return %arg0, %c0_i32 : i32, i32
  }
  func.func @transform_3(%arg0: i32, %arg1: i32) -> (i32, i32) {
    %c0_i32 = arith.constant 0 : i32
    %c0_i32_0 = arith.constant 0 : i32
    %c0_i32_1 = arith.constant 0 : i32
    return %c0_i32, %c0_i32_0 : i32, i32
  }
  func.func @transform_4(%arg0: i32, %arg1: i32) -> (i32, i32) {
    %c0_i32 = arith.constant 0 : i32
    %c0_i32_0 = arith.constant 0 : i32
    %c0_i32_1 = arith.constant 0 : i32
    return %c0_i32, %c0_i32_0 : i32, i32
  }
  func.func @transform_5(%arg0: i32, %arg1: i32) -> (i32, i32) {
    %c0_i32 = arith.constant 0 : i32
    %c0_i32_0 = arith.constant 0 : i32
    %c0_i32_1 = arith.constant 0 : i32
    return %c0_i32, %c0_i32_0 : i32, i32
  }
  func.func @transform_6(%arg0: i32, %arg1: i32) -> (i32, i32) {
    %c0_i32 = arith.constant 0 : i32
    %c0_i32_0 = arith.constant 0 : i32
    %c0_i32_1 = arith.constant 0 : i32
    return %c0_i32, %c0_i32_0 : i32, i32
  }
  func.func @transform_7(%arg0: i32, %arg1: i32) -> (i32, i32) {
    %c0_i32 = arith.constant 0 : i32
    %c0_i32_0 = arith.constant 0 : i32
    %c0_i32_1 = arith.constant 0 : i32
    return %c0_i32, %c0_i32_0 : i32, i32
  }
  func.func @transform_8(%arg0: i32, %arg1: i32) -> (i32, i32) {
    %c0_i32 = arith.constant 0 : i32
    %c0_i32_0 = arith.constant 0 : i32
    return %arg0, %c0_i32 : i32, i32
  }
}

</mosaic_0001>

<llo_original>
// kernel: userconv_forward.1
$region0: #{userconv_forward.1}
  #allocation0 [shape = 'u32[]', space=smem, size = 0x4, offset = 0x4, fixed_abs, tag = 'smem constant byte address 0x4 - core index']
  #allocation1 [shape = 'u32[144,128]{1,0:T(1,128)}', space=vmem, size = 0x12000, scoped, tag = 'internal scratch']
  #allocation2 [shape = 'f32[32,128]{1,0:T(8,128)}', space=vmem, size = 0x4000, scoped, tag = 'scratch operand']
  %s0 = inlined_call_operand.hbm [shape: bf16[32,128], index: 0, kind: input, shape index: {}]
  %s1 = inlined_call_operand.hbm [shape: bf16[128,128], index: 1, kind: input, shape index: {}]
  %s2 = inlined_call_operand.hbm [shape: bf16[32,16], index: 2, kind: input, shape index: {}]
  %s3 = inlined_call_operand.hbm [shape: bf16[16,32], index: 3, kind: input, shape index: {}]
  %s4 = inlined_call_operand.hbm [shape: bf16[128,32], index: 4, kind: input, shape index: {}]
  %s5 = inlined_call_operand.hbm [shape: f32[1,32], index: 5, kind: input, shape index: {}]
  %s6 = inlined_call_operand.hbm [shape: bf16[32,128], index: 6, kind: input, shape index: {}]
  %s7 = inlined_call_operand.hbm [shape: f32[1,128], index: 7, kind: input, shape index: {}]
  %s8 = inlined_call_operand.hbm [shape: f32[32,128], index: 8, kind: output, shape index: {}]
  %s9 = sld [smem:[#allocation0]]
  $region82: #{userconv_forward.1} parent=0
    _
  %s11 = ssub.s32 1, %s9
  %s12 = scalar_select 0, %s11, %s9
  $region1: #{userconv_forward.1} parent=0
    #allocation3 [shape = 'u8[8192]{0}', space=vmem, size = 0x2000, scoped, tag = 'input window, operand 0, single buffered']
    #allocation4 [shape = 's32[1]{0}', space=sflag, size = 0x4, scoped, tag = 'scoped memory for userconv_forward.1']
    #allocation5 [shape = 's32[1]{0}', space=sflag, size = 0x4, scoped, tag = 'scoped memory for userconv_forward.1']
    #allocation6 [shape = 'u8[32768]{0}', space=vmem, size = 0x8000, scoped, tag = 'input window, operand 1, single buffered']
    #allocation7 [shape = 's32[1]{0}', space=sflag, size = 0x4, scoped, tag = 'scoped memory for userconv_forward.1']
    #allocation8 [shape = 'u8[8192]{0}', space=vmem, size = 0x2000, scoped, tag = 'input window, operand 2, single buffered']
    #allocation9 [shape = 'u8[4096]{0}', space=vmem, size = 0x1000, scoped, tag = 'input window, operand 3, single buffered']
    #allocation10 [shape = 's32[1]{0}', space=sflag, size = 0x4, scoped, tag = 'scoped memory for userconv_forward.1']
    #allocation11 [shape = 'u8[32768]{0}', space=vmem, size = 0x8000, scoped, tag = 'input window, operand 4, single buffered']
    #allocation12 [shape = 'u8[512]{0}', space=vmem, size = 0x400, scoped, tag = 'input window, operand 5, single buffered']
    #allocation13 [shape = 's32[1]{0}', space=sflag, size = 0x4, scoped, tag = 'scoped memory for userconv_forward.1']
    #allocation14 [shape = 'u8[8192]{0}', space=vmem, size = 0x2000, scoped, tag = 'input window, operand 6, single buffered']
    #allocation15 [shape = 'u8[512]{0}', space=vmem, size = 0x400, scoped, tag = 'input window, operand 7, single buffered']
    #allocation16 [shape = 's32[1]{0}', space=sflag, size = 0x4, scoped, tag = 'scoped memory for userconv_forward.1']
    #allocation17 [shape = 'u8[16384]{0}', space=vmem, size = 0x4000, scoped, tag = 'output window, operand 0, single buffered']
    %13 = vsyncpa [#allocation4], 0
    %14 = vsyncpa [#allocation7], 0
    %15 = vsyncpa [#allocation10], 0
    %16 = vsyncpa [#allocation13], 0
    %17 = vsyncpa [#allocation16], 0
    %18 = vsyncpa [#allocation5], 0
    // Predicated region
    $region2: #{userconv_forward.1} parent=1 // pred_check
      _
    $region3: #{userconv_forward.1} parent=1 // pred_check_branch
      %20 = sbr.rel (0) target = $region5
    $region4: #{userconv_forward.1} parent=1 // pred_region
      %s22 = ssub.s32 256, 256
      %23 = vsyncadd [#allocation4], %s22
      %s24 = sshll.u32 [#allocation3], 4
      %s25 = int_to_ptr.vmem [resolvable:$true] %s24
      %30 = dma.hbm_to_vmem [thread:$0]  %s0, 256, %s25, [#allocation4], 64, 64, 4
    $region5: #{userconv_forward.1} parent=1 // pred_fallthru
      _
    // Predicated region
    $region6: #{userconv_forward.1} parent=1 // pred_check
      _
    $region7: #{userconv_forward.1} parent=1 // pred_check_branch
      %32 = sbr.rel (0) target = $region9
    $region8: #{userconv_forward.1} parent=1 // pred_region
      %s34 = ssub.s32 1024, 1024
      %35 = vsyncadd [#allocation7], %s34
      %s36 = sshll.u32 [#allocation6], 4
      %s37 = int_to_ptr.vmem [resolvable:$true] %s36
      %42 = dma.hbm_to_vmem [thread:$0]  %s1, 1024, %s37, [#allocation7], 64, 64, 4
    $region9: #{userconv_forward.1} parent=1 // pred_fallthru
      _
    // Predicated region
    $region10: #{userconv_forward.1} parent=1 // pred_check
      _
    $region11: #{userconv_forward.1} parent=1 // pred_check_branch
      %44 = sbr.rel (0) target = $region13
    $region12: #{userconv_forward.1} parent=1 // pred_region
      %s46 = ssub.s32 256, 256
      %47 = vsyncadd [#allocation7], %s46
      %s48 = sshll.u32 [#allocation8], 4
      %s49 = int_to_ptr.vmem [resolvable:$true] %s48
      %54 = dma.hbm_to_vmem [thread:$0]  %s2, 256, %s49, [#allocation7], 64, 64, 4
    $region13: #{userconv_forward.1} parent=1 // pred_fallthru
      _
    // Predicated region
    $region14: #{userconv_forward.1} parent=1 // pred_check
      _
    $region15: #{userconv_forward.1} parent=1 // pred_check_branch
      %56 = sbr.rel (0) target = $region17
    $region16: #{userconv_forward.1} parent=1 // pred_region
      %s58 = ssub.s32 128, 128
      %59 = vsyncadd [#allocation10], %s58
      %s60 = sshll.u32 [#allocation9], 4
      %s61 = int_to_ptr.vmem [resolvable:$true] %s60
      %66 = dma.hbm_to_vmem [thread:$0]  %s3, 128, %s61, [#allocation10], 64, 64, 4
    $region17: #{userconv_forward.1} parent=1 // pred_fallthru
      _
    // Predicated region
    $region18: #{userconv_forward.1} parent=1 // pred_check
      _
    $region19: #{userconv_forward.1} parent=1 // pred_check_branch
      %68 = sbr.rel (0) target = $region21
    $region20: #{userconv_forward.1} parent=1 // pred_region
      %s70 = ssub.s32 1024, 1024
      %71 = vsyncadd [#allocation10], %s70
      %s72 = sshll.u32 [#allocation11], 4
      %s73 = int_to_ptr.vmem [resolvable:$true] %s72
      %78 = dma.hbm_to_vmem [thread:$0]  %s4, 1024, %s73, [#allocation10], 64, 64, 4
    $region21: #{userconv_forward.1} parent=1 // pred_fallthru
      _
    // Predicated region
    $region22: #{userconv_forward.1} parent=1 // pred_check
      _
    $region23: #{userconv_forward.1} parent=1 // pred_check_branch
      %80 = sbr.rel (0) target = $region25
    $region24: #{userconv_forward.1} parent=1 // pred_region
      %s82 = ssub.s32 16, 16
      %83 = vsyncadd [#allocation13], %s82
      %s85 = sshll.u32 [#allocation12], 4
      %s86 = int_to_ptr.vmem [resolvable:$true] %s85
      %88 = dma.hbm_to_vmem [thread:$0]  %s5, 16, %s86, [#allocation13]
    $region25: #{userconv_forward.1} parent=1 // pred_fallthru
      _
    // Predicated region
    $region26: #{userconv_forward.1} parent=1 // pred_check
      _
    $region27: #{userconv_forward.1} parent=1 // pred_check_branch
      %90 = sbr.rel (0) target = $region29
    $region28: #{userconv_forward.1} parent=1 // pred_region
      %s92 = ssub.s32 256, 256
      %93 = vsyncadd [#allocation13], %s92
      %s94 = sshll.u32 [#allocation14], 4
      %s95 = int_to_ptr.vmem [resolvable:$true] %s94
      %100 = dma.hbm_to_vmem [thread:$0]  %s6, 256, %s95, [#allocation13], 64, 64, 4
    $region29: #{userconv_forward.1} parent=1 // pred_fallthru
      _
    // Predicated region
    $region30: #{userconv_forward.1} parent=1 // pred_check
      _
    $region31: #{userconv_forward.1} parent=1 // pred_check_branch
      %102 = sbr.rel (0) target = $region33
    $region32: #{userconv_forward.1} parent=1 // pred_region
      %s104 = ssub.s32 16, 16
      %105 = vsyncadd [#allocation16], %s104
      %s107 = sshll.u32 [#allocation15], 4
      %s108 = int_to_ptr.vmem [resolvable:$true] %s107
      %110 = dma.hbm_to_vmem [thread:$0]  %s7, 16, %s108, [#allocation16]
    $region33: #{userconv_forward.1} parent=1 // pred_fallthru
      _
    // Predicated region
    $region34: #{userconv_forward.1} parent=1 // pred_check
      _
    $region35: #{userconv_forward.1} parent=1 // pred_check_branch
      %112 = sbr.rel (0) target = $region37
    $region36: #{userconv_forward.1} parent=1 // pred_region
      %113 = dma.done [#allocation4], 256
    $region37: #{userconv_forward.1} parent=1 // pred_fallthru
      _
    // Predicated region
    $region38: #{userconv_forward.1} parent=1 // pred_check
      _
    $region39: #{userconv_forward.1} parent=1 // pred_check_branch
      %115 = sbr.rel (0) target = $region41
    $region40: #{userconv_forward.1} parent=1 // pred_region
      %116 = dma.done [#allocation7], 1024
    $region41: #{userconv_forward.1} parent=1 // pred_fallthru
      _
    // Predicated region
    $region42: #{userconv_forward.1} parent=1 // pred_check
      _
    $region43: #{userconv_forward.1} parent=1 // pred_check_branch
      %118 = sbr.rel (0) target = $region45
    $region44: #{userconv_forward.1} parent=1 // pred_region
      %119 = dma.done [#allocation7], 256
    $region45: #{userconv_forward.1} parent=1 // pred_fallthru
      _
    // Predicated region
    $region46: #{userconv_forward.1} parent=1 // pred_check
      _
    $region47: #{userconv_forward.1} parent=1 // pred_check_branch
      %121 = sbr.rel (0) target = $region49
    $region48: #{userconv_forward.1} parent=1 // pred_region
      %122 = dma.done [#allocation10], 128
    $region49: #{userconv_forward.1} parent=1 // pred_fallthru
      _
    // Predicated region
    $region50: #{userconv_forward.1} parent=1 // pred_check
      _
    $region51: #{userconv_forward.1} parent=1 // pred_check_branch
      %124 = sbr.rel (0) target = $region53
    $region52: #{userconv_forward.1} parent=1 // pred_region
      %125 = dma.done [#allocation10], 1024
    $region53: #{userconv_forward.1} parent=1 // pred_fallthru
      _
    // Predicated region
    $region54: #{userconv_forward.1} parent=1 // pred_check
      _
    $region55: #{userconv_forward.1} parent=1 // pred_check_branch
      %127 = sbr.rel (0) target = $region57
    $region56: #{userconv_forward.1} parent=1 // pred_region
      %128 = dma.done [#allocation13], 16
    $region57: #{userconv_forward.1} parent=1 // pred_fallthru
      _
    // Predicated region
    $region58: #{userconv_forward.1} parent=1 // pred_check
      _
    $region59: #{userconv_forward.1} parent=1 // pred_check_branch
      %130 = sbr.rel (0) target = $region61
    $region60: #{userconv_forward.1} parent=1 // pred_region
      %131 = dma.done [#allocation13], 256
    $region61: #{userconv_forward.1} parent=1 // pred_fallthru
      _
    // Predicated region
    $region62: #{userconv_forward.1} parent=1 // pred_check
      _
    $region63: #{userconv_forward.1} parent=1 // pred_check_branch
      %133 = sbr.rel (0) target = $region65
    $region64: #{userconv_forward.1} parent=1 // pred_region
      %134 = dma.done [#allocation16], 16
    $region65: #{userconv_forward.1} parent=1 // pred_fallthru
      _
    %p136 = scmp.eq.s32.totalorder 0, 0
    // Predicated region
    $region66: #{userconv_forward.1} parent=1 // pred_check
      %p137 = pneg %p136
    $region67: #{userconv_forward.1} parent=1 // pred_check_branch
      %139 = sbr.rel (%p137) target = $region69
    $region68: #{userconv_forward.1} parent=1 // pred_region
      %140 = vst [vmem:[#allocation2] sm:$0xff] 0.0
      %141 = vst [vmem:[#allocation2 + $0x8] sm:$0xff] 0.0
      %142 = vst [vmem:[#allocation2 + $0x10] sm:$0xff] 0.0
      %143 = vst [vmem:[#allocation2 + $0x18] sm:$0xff] 0.0
    $region69: #{userconv_forward.1} parent=1 // pred_fallthru
      _
    %s144 = smul.u32 0, 128
    %s145 = sshra.s32 %s144, 3
    %s146 = sand.u32 %s144, 7
    %s147 = smul.addr %s145, 4
    %s148 = scalar_lea.vmem [#allocation6], %s147
    %v149 = vld [vmem:[%s148] sm:$0xf]
    %v150 = vld [vmem:[%s148 + $0x4] sm:$0xf]
    %v151 = vld [vmem:[%s148 + $0x8] sm:$0xf]
    %v152 = vld [vmem:[%s148 + $0xc] sm:$0xf]
    %v153 = vld [vmem:[%s148 + $0x10] sm:$0xf]
    %v154 = vld [vmem:[%s148 + $0x14] sm:$0xf]
    %v155 = vld [vmem:[%s148 + $0x18] sm:$0xf]
    %v156 = vld [vmem:[%s148 + $0x1c] sm:$0xf]
    %v157 = vld [vmem:[%s148 + $0x20] sm:$0xf]
    %v158 = vld [vmem:[%s148 + $0x24] sm:$0xf]
    %v159 = vld [vmem:[%s148 + $0x28] sm:$0xf]
    %v160 = vld [vmem:[%s148 + $0x2c] sm:$0xf]
    %v161 = vld [vmem:[%s148 + $0x30] sm:$0xf]
    %v162 = vld [vmem:[%s148 + $0x34] sm:$0xf]
    %v163 = vld [vmem:[%s148 + $0x38] sm:$0xf]
    %v164 = vld [vmem:[%s148 + $0x3c] sm:$0xf]
    %v165 = vld [vmem:[#allocation2] sm:$0xff]
    %v166 = vld [vmem:[#allocation2 + $0x8] sm:$0xff]
    %v167 = vld [vmem:[#allocation2 + $0x10] sm:$0xff]
    %v168 = vld [vmem:[#allocation2 + $0x18] sm:$0xff]
    %v169 = vld [vmem:[#allocation3] sm:$0xf]
    %v170 = vld [vmem:[#allocation3 + $0x4] sm:$0xf]
    %v171 = vld [vmem:[#allocation3 + $0x8] sm:$0xf]
    %v172 = vld [vmem:[#allocation3 + $0xc] sm:$0xf]
    %v177 = vunpack.c.l.b16 %v169
    %v178 = vunpack.c.l.b16 %v170
    %v179 = vunpack.c.l.b16 %v171
    %v180 = vunpack.c.l.b16 %v172
    %v181 = vpack.c.b16 %v178, %v177
    %v182 = vpack.c.b16 %v180, %v179
    %v201 = vunpack.c.l.b16 %v149
    %v202 = vunpack.c.l.b16 %v150
    %v203 = vunpack.c.l.b16 %v151
    %v204 = vunpack.c.l.b16 %v152
    %v205 = vunpack.c.l.b16 %v153
    %v206 = vunpack.c.l.b16 %v154
    %v207 = vunpack.c.l.b16 %v155
    %v208 = vunpack.c.l.b16 %v156
    %v209 = vunpack.c.l.b16 %v157
    %v210 = vunpack.c.l.b16 %v158
    %v211 = vunpack.c.l.b16 %v159
    %v212 = vunpack.c.l.b16 %v160
    %v213 = vunpack.c.l.b16 %v161
    %v214 = vunpack.c.l.b16 %v162
    %v215 = vunpack.c.l.b16 %v163
    %v216 = vunpack.c.l.b16 %v164
    %v217 = vpack.c.b16 %v202, %v201
    %v218 = vpack.c.b16 %v204, %v203
    %v219 = vpack.c.b16 %v206, %v205
    %v220 = vpack.c.b16 %v208, %v207
    %v221 = vpack.c.b16 %v210, %v209
    %v222 = vpack.c.b16 %v212, %v211
    %v223 = vpack.c.b16 %v214, %v213
    %v224 = vpack.c.b16 %v216, %v215
    %233 = vmatprep.subr.bf16.mxu0 0
    %234 = vmatpush1.bf16.msra.mxu0 %v217
    %235 = vmatprep.subr.bf16.mxu0 0
    %236 = vmatpush1.bf16.msra.mxu0 %v218
    %237 = vmatprep.subr.bf16.mxu0 0
    %238 = vmatpush1.bf16.msra.mxu0 %v219
    %239 = vmatprep.subr.bf16.mxu0 0
    %240 = vmatpush1.bf16.msra.mxu0 %v220
    %241 = vmatprep.subr.bf16.mxu0 0
    %242 = vmatpush1.bf16.msra.mxu0 %v221
    %243 = vmatprep.subr.bf16.mxu0 0
    %244 = vmatpush1.bf16.msra.mxu0 %v222
    %245 = vmatprep.subr.bf16.mxu0 0
    %246 = vmatpush1.bf16.msra.mxu0 %v223
    %247 = vmatprep.subr.bf16.mxu0 0
    %248 = vmatpush1.bf16.msra.mxu0 %v224
    %249 = vmatprep.subr.bf16.mxu0 0
    %250 = vmatpush1.bf16.msra.mxu0 0
    %251 = vmatprep.subr.bf16.mxu0 0
    %252 = vmatpush1.bf16.msra.mxu0 0
    %253 = vmatprep.subr.bf16.mxu0 0
    %254 = vmatpush1.bf16.msra.mxu0 0
    %255 = vmatprep.subr.bf16.mxu0 0
    %256 = vmatpush1.bf16.msra.mxu0 0
    %257 = vmatprep.subr.bf16.mxu0 0
    %258 = vmatpush1.bf16.msra.mxu0 0
    %259 = vmatprep.subr.bf16.mxu0 0
    %260 = vmatpush1.bf16.msra.mxu0 0
    %261 = vmatprep.subr.bf16.mxu0 0
    %262 = vmatpush1.bf16.msra.mxu0 0
    %263 = vmatprep.subr.bf16.mxu0 0
    %264 = vmatpush1.bf16.msra.mxu0 0
    %265 = vmatprep.mubr.bf16.mxu0 0
    %266 = vmatmul.mubr.bf16.gmra.mrb[0].mxu0 %v181
    %v267 = vpop.f32.mrb[0].mxu0
    %v268 = vadd.f32 0.0, %v267
    %v269 = vpop.f32.mrb[0].mxu0
    %v270 = vpop.f32.mrb[0].mxu0
    %v271 = vadd.f32 0.0, %v270
    %v272 = vpop.f32.mrb[0].mxu0
    %273 = vmatprep.mubr.bf16.mxu0 0
    %274 = vmatmul.mubr.bf16.gmra.mrb[0].mxu0 %v182
    %v275 = vpop.f32.mrb[0].mxu0
    %v276 = vadd.f32 0.0, %v275
    %v277 = vpop.f32.mrb[0].mxu0
    %v278 = vpop.f32.mrb[0].mxu0
    %v279 = vadd.f32 0.0, %v278
    %v280 = vpop.f32.mrb[0].mxu0
    %281 = vdwg.mxu0
    %v282 = vadd.f32 %v165, %v268
    %v283 = vadd.f32 %v166, %v271
    %v284 = vadd.f32 %v167, %v276
    %v285 = vadd.f32 %v168, %v279
    %286 = vst [vmem:[#allocation2] sm:$0xff] %v282
    %287 = vst [vmem:[#allocation2 + $0x8] sm:$0xff] %v283
    %288 = vst [vmem:[#allocation2 + $0x10] sm:$0xff] %v284
    %289 = vst [vmem:[#allocation2 + $0x18] sm:$0xff] %v285
    // Predicated region
    $region70: #{userconv_forward.1} parent=1 // pred_check
      %p290 = pneg %p136
    $region71: #{userconv_forward.1} parent=1 // pred_check_branch
      %292 = sbr.rel (%p290) target = $region73
    $region72: #{userconv_forward.1} parent=1 // pred_region
      %v293 = vld [vmem:[#allocation2] sm:$0xff]
      %v294 = vld [vmem:[#allocation2 + $0x8] sm:$0xff]
      %v295 = vld [vmem:[#allocation2 + $0x10] sm:$0xff]
      %v296 = vld [vmem:[#allocation2 + $0x18] sm:$0xff]
      %v297 = vadd.f32 %v293, 1e-08
      %v298 = vadd.f32 %v294, 1e-08
      %v299 = vadd.f32 %v295, 1e-08
      %v300 = vadd.f32 %v296, 1e-08
      %v301 = vrcp.pop %v297
      %v302 = vmul.f32 1.0, %v301
      %v303 = vrcp.pop %v298
      %v304 = vmul.f32 1.0, %v303
      %v305 = vrcp.pop %v299
      %v306 = vmul.f32 1.0, %v305
      %v307 = vrcp.pop %v300
      %v308 = vmul.f32 1.0, %v307
      %310 = vset.pattern.permute.xlu0 16
      %311 = vperm.xlu0 %310, %v302
      %v312 = vpop.permute.xlu0 %311
      %315 = vset.pattern.permute.xlu0 16
      %316 = vperm.xlu0 %315, %v304
      %v317 = vpop.permute.xlu0 %316
      %320 = vset.pattern.permute.xlu0 16
      %321 = vperm.xlu0 %320, %v306
      %v322 = vpop.permute.xlu0 %321
      %325 = vset.pattern.permute.xlu0 16
      %326 = vperm.xlu0 %325, %v308
      %v327 = vpop.permute.xlu0 %326
      %v329 = vmul.f32 %v293, %v312
      %v330 = vmul.f32 %v294, %v317
      %v331 = vmul.f32 %v295, %v322
      %v332 = vmul.f32 %v296, %v327
      %v333 = vld [vmem:[#allocation8] sm:$0xf]
      %v334 = vld [vmem:[#allocation8 + $0x4] sm:$0xf]
      %v335 = vld [vmem:[#allocation8 + $0x8] sm:$0xf]
      %v336 = vld [vmem:[#allocation8 + $0xc] sm:$0xf]
      %v337 = vld [vmem:[#allocation9] sm:$0xf]
      %v338 = vld [vmem:[#allocation9 + $0x4] sm:$0xf]
      %v339 = vpack.c.bf16 %v330, %v329
      %v340 = vpack.c.bf16 %v332, %v331
      %v341 = vld [vmem:[#allocation11] sm:$0xf]
      %v342 = vld [vmem:[#allocation11 + $0x4] sm:$0xf]
      %v343 = vld [vmem:[#allocation11 + $0x8] sm:$0xf]
      %v344 = vld [vmem:[#allocation11 + $0xc] sm:$0xf]
      %v345 = vld [vmem:[#allocation11 + $0x10] sm:$0xf]
      %v346 = vld [vmem:[#allocation11 + $0x14] sm:$0xf]
      %v347 = vld [vmem:[#allocation11 + $0x18] sm:$0xf]
      %v348 = vld [vmem:[#allocation11 + $0x1c] sm:$0xf]
      %v349 = vld [vmem:[#allocation11 + $0x20] sm:$0xf]
      %v350 = vld [vmem:[#allocation11 + $0x24] sm:$0xf]
      %v351 = vld [vmem:[#allocation11 + $0x28] sm:$0xf]
      %v352 = vld [vmem:[#allocation11 + $0x2c] sm:$0xf]
      %v353 = vld [vmem:[#allocation11 + $0x30] sm:$0xf]
      %v354 = vld [vmem:[#allocation11 + $0x34] sm:$0xf]
      %v355 = vld [vmem:[#allocation11 + $0x38] sm:$0xf]
      %v356 = vld [vmem:[#allocation11 + $0x3c] sm:$0xf]
      %v373 = vunpack.c.l.b16 %v341
      %v374 = vunpack.c.l.b16 %v342
      %v375 = vunpack.c.l.b16 %v343
      %v376 = vunpack.c.l.b16 %v344
      %v377 = vunpack.c.l.b16 %v345
      %v378 = vunpack.c.l.b16 %v346
      %v379 = vunpack.c.l.b16 %v347
      %v380 = vunpack.c.l.b16 %v348
      %v381 = vunpack.c.l.b16 %v349
      %v382 = vunpack.c.l.b16 %v350
      %v383 = vunpack.c.l.b16 %v351
      %v384 = vunpack.c.l.b16 %v352
      %v385 = vunpack.c.l.b16 %v353
      %v386 = vunpack.c.l.b16 %v354
      %v387 = vunpack.c.l.b16 %v355
      %v388 = vunpack.c.l.b16 %v356
      %v389 = vpack.c.b16 %v374, %v373
      %v390 = vpack.c.b16 %v376, %v375
      %v391 = vpack.c.b16 %v378, %v377
      %v392 = vpack.c.b16 %v380, %v379
      %v393 = vpack.c.b16 %v382, %v381
      %v394 = vpack.c.b16 %v384, %v383
      %v395 = vpack.c.b16 %v386, %v385
      %v396 = vpack.c.b16 %v388, %v387
      %405 = vmatprep.subr.bf16.mxu0 0
      %406 = vmatpush1.bf16.msra.mxu0 %v389
      %407 = vmatprep.subr.bf16.mxu0 0
      %408 = vmatpush1.bf16.msra.mxu0 %v390
      %409 = vmatprep.subr.bf16.mxu0 0
      %410 = vmatpush1.bf16.msra.mxu0 %v391
      %411 = vmatprep.subr.bf16.mxu0 0
      %412 = vmatpush1.bf16.msra.mxu0 %v392
      %413 = vmatprep.subr.bf16.mxu0 0
      %414 = vmatpush1.bf16.msra.mxu0 %v393
      %415 = vmatprep.subr.bf16.mxu0 0
      %416 = vmatpush1.bf16.msra.mxu0 %v394
      %417 = vmatprep.subr.bf16.mxu0 0
      %418 = vmatpush1.bf16.msra.mxu0 %v395
      %419 = vmatprep.subr.bf16.mxu0 0
      %420 = vmatpush1.bf16.msra.mxu0 %v396
      %421 = vmatprep.subr.bf16.mxu0 0
      %422 = vmatpush1.bf16.msra.mxu0 0
      %423 = vmatprep.subr.bf16.mxu0 0
      %424 = vmatpush1.bf16.msra.mxu0 0
      %425 = vmatprep.subr.bf16.mxu0 0
      %426 = vmatpush1.bf16.msra.mxu0 0
      %427 = vmatprep.subr.bf16.mxu0 0
      %428 = vmatpush1.bf16.msra.mxu0 0
      %429 = vmatprep.subr.bf16.mxu0 0
      %430 = vmatpush1.bf16.msra.mxu0 0
      %431 = vmatprep.subr.bf16.mxu0 0
      %432 = vmatpush1.bf16.msra.mxu0 0
      %433 = vmatprep.subr.bf16.mxu0 0
      %434 = vmatpush1.bf16.msra.mxu0 0
      %435 = vmatprep.subr.bf16.mxu0 0
      %436 = vmatpush1.bf16.msra.mxu0 0
      %437 = vmatprep.mubr.bf16.mxu0 0
      %438 = vmatmul.mubr.bf16.gmra.mrb[0].mxu0 %v339
      %v439 = vpop.f32.mrb[0].mxu0
      %v440 = vadd.f32 0.0, %v439
      %v441 = vpop.f32.mrb[0].mxu0
      %v442 = vpop.f32.mrb[0].mxu0
      %v443 = vadd.f32 0.0, %v442
      %v444 = vpop.f32.mrb[0].mxu0
      %445 = vmatprep.mubr.bf16.mxu0 0
      %446 = vmatmul.mubr.bf16.gmra.mrb[0].mxu0 %v340
      %v447 = vpop.f32.mrb[0].mxu0
      %v448 = vadd.f32 0.0, %v447
      %v449 = vpop.f32.mrb[0].mxu0
      %v450 = vpop.f32.mrb[0].mxu0
      %v451 = vadd.f32 0.0, %v450
      %v452 = vpop.f32.mrb[0].mxu0
      %453 = vdwg.mxu0
      %v458 = vunpack.c.l.b16 %v333
      %v459 = vunpack.c.l.b16 %v334
      %v460 = vunpack.c.l.b16 %v335
      %v461 = vunpack.c.l.b16 %v336
      %v462 = vpack.c.b16 %v459, %v458
      %v463 = vpack.c.b16 %v461, %v460
      %v466 = vunpack.c.l.b16 %v337
      %v467 = vunpack.c.l.b16 %v338
      %v468 = vpack.c.b16 %v467, %v466
      %vm470 = vcmask 130048
      %v472 = vsel %vm470, %v462, 0
      %v475 = vsel %vm470, %v463, 0
      %477 = vmatprep.subr.bf16.mxu0 0
      %478 = vmatpush1.bf16.msra.mxu0 %v468
      %479 = vmatprep.subr.bf16.mxu0 0
      %480 = vmatpush1.bf16.msra.mxu0 0
      %481 = vmatprep.subr.bf16.mxu0 0
      %482 = vmatpush1.bf16.msra.mxu0 0
      %483 = vmatprep.subr.bf16.mxu0 0
      %484 = vmatpush1.bf16.msra.mxu0 0
      %485 = vmatprep.subr.bf16.mxu0 0
      %486 = vmatpush1.bf16.msra.mxu0 0
      %487 = vmatprep.subr.bf16.mxu0 0
      %488 = vmatpush1.bf16.msra.mxu0 0
      %489 = vmatprep.subr.bf16.mxu0 0
      %490 = vmatpush1.bf16.msra.mxu0 0
      %491 = vmatprep.subr.bf16.mxu0 0
      %492 = vmatpush1.bf16.msra.mxu0 0
      %493 = vmatprep.subr.bf16.mxu0 0
      %494 = vmatpush1.bf16.msra.mxu0 0
      %495 = vmatprep.subr.bf16.mxu0 0
      %496 = vmatpush1.bf16.msra.mxu0 0
      %497 = vmatprep.subr.bf16.mxu0 0
      %498 = vmatpush1.bf16.msra.mxu0 0
      %499 = vmatprep.subr.bf16.mxu0 0
      %500 = vmatpush1.bf16.msra.mxu0 0
      %501 = vmatprep.subr.bf16.mxu0 0
      %502 = vmatpush1.bf16.msra.mxu0 0
      %503 = vmatprep.subr.bf16.mxu0 0
      %504 = vmatpush1.bf16.msra.mxu0 0
      %505 = vmatprep.subr.bf16.mxu0 0
      %506 = vmatpush1.bf16.msra.mxu0 0
      %507 = vmatprep.subr.bf16.mxu0 0
      %508 = vmatpush1.bf16.msra.mxu0 0
      %509 = vmatprep.mubr.bf16.mxu0 0
      %510 = vmatmul.mubr.bf16.gmra.mrb[0].mxu0 %v472
      %v511 = vpop.f32.mrb[0].mxu0
      %v512 = vadd.f32 %v440, %v511
      %v513 = vpop.f32.mrb[0].mxu0
      %v514 = vpop.f32.mrb[0].mxu0
      %v515 = vadd.f32 %v443, %v514
      %v516 = vpop.f32.mrb[0].mxu0
      %517 = vmatprep.mubr.bf16.mxu0 0
      %518 = vmatmul.mubr.bf16.gmra.mrb[0].mxu0 %v475
      %v519 = vpop.f32.mrb[0].mxu0
      %v520 = vadd.f32 %v448, %v519
      %v521 = vpop.f32.mrb[0].mxu0
      %v522 = vpop.f32.mrb[0].mxu0
      %v523 = vadd.f32 %v451, %v522
      %v524 = vpop.f32.mrb[0].mxu0
      %525 = vdwg.mxu0
      %v526 = vld [vmem:[#allocation12] sm:$0x1]
      %v528 = vlaneseq
      %v529 = vshrl.u32 %v528, 7
      %v530 = vsub.s32 0, %v529
      %v531 = vrot.slane %v526, %v530
      %v533 = vadd.f32 %v512, %v531
      %v534 = vadd.f32 %v515, %v531
      %v535 = vadd.f32 %v520, %v531
      %v536 = vadd.f32 %v523, %v531
      %v537 = vtanh.pop %v533
      %v538 = vtanh.pop %v534
      %v539 = vtanh.pop %v535
      %v540 = vtanh.pop %v536
      %v541 = vpack.c.bf16 %v538, %v537
      %v542 = vpack.c.bf16 %v540, %v539
      %v543 = vld [vmem:[#allocation14] sm:$0xf]
      %v544 = vld [vmem:[#allocation14 + $0x4] sm:$0xf]
      %v545 = vld [vmem:[#allocation14 + $0x8] sm:$0xf]
      %v546 = vld [vmem:[#allocation14 + $0xc] sm:$0xf]
      %v547 = vld [vmem:[#allocation15] sm:$0x1]
      %v549 = vlaneseq
      %v550 = vshrl.u32 %v549, 7
      %v551 = vsub.s32 0, %v550
      %v552 = vrot.slane %v547, %v551
      %v558 = vunpack.c.l.b16 %v543
      %v559 = vunpack.c.l.b16 %v544
      %v560 = vunpack.c.l.b16 %v545
      %v561 = vunpack.c.l.b16 %v546
      %v562 = vpack.c.b16 %v559, %v558
      %v563 = vpack.c.b16 %v561, %v560
      %vm566 = vcmask 261120
      %v568 = vsel %vm566, %v541, 0
      %v571 = vsel %vm566, %v542, 0
      %573 = vmatprep.subr.bf16.mxu0 0
      %574 = vmatpush1.bf16.msra.mxu0 %v562
      %575 = vmatprep.subr.bf16.mxu0 0
      %576 = vmatpush1.bf16.msra.mxu0 %v563
      %577 = vmatprep.subr.bf16.mxu0 0
      %578 = vmatpush1.bf16.msra.mxu0 0
      %579 = vmatprep.subr.bf16.mxu0 0
      %580 = vmatpush1.bf16.msra.mxu0 0
      %581 = vmatprep.subr.bf16.mxu0 0
      %582 = vmatpush1.bf16.msra.mxu0 0
      %583 = vmatprep.subr.bf16.mxu0 0
      %584 = vmatpush1.bf16.msra.mxu0 0
      %585 = vmatprep.subr.bf16.mxu0 0
      %586 = vmatpush1.bf16.msra.mxu0 0
      %587 = vmatprep.subr.bf16.mxu0 0
      %588 = vmatpush1.bf16.msra.mxu0 0
      %589 = vmatprep.subr.bf16.mxu0 0
      %590 = vmatpush1.bf16.msra.mxu0 0
      %591 = vmatprep.subr.bf16.mxu0 0
      %592 = vmatpush1.bf16.msra.mxu0 0
      %593 = vmatprep.subr.bf16.mxu0 0
      %594 = vmatpush1.bf16.msra.mxu0 0
      %595 = vmatprep.subr.bf16.mxu0 0
      %596 = vmatpush1.bf16.msra.mxu0 0
      %597 = vmatprep.subr.bf16.mxu0 0
      %598 = vmatpush1.bf16.msra.mxu0 0
      %599 = vmatprep.subr.bf16.mxu0 0
      %600 = vmatpush1.bf16.msra.mxu0 0
      %601 = vmatprep.subr.bf16.mxu0 0
      %602 = vmatpush1.bf16.msra.mxu0 0
      %603 = vmatprep.subr.bf16.mxu0 0
      %604 = vmatpush1.bf16.msra.mxu0 0
      %605 = vmatprep.mubr.bf16.mxu0 0
      %606 = vmatmul.mubr.bf16.gmra.mrb[0].mxu0 %v568
      %v607 = vpop.f32.mrb[0].mxu0
      %v608 = vadd.f32 %v552, %v607
      %v609 = vpop.f32.mrb[0].mxu0
      %v610 = vpop.f32.mrb[0].mxu0
      %v611 = vadd.f32 %v552, %v610
      %v612 = vpop.f32.mrb[0].mxu0
      %613 = vmatprep.mubr.bf16.mxu0 0
      %614 = vmatmul.mubr.bf16.gmra.mrb[0].mxu0 %v571
      %v615 = vpop.f32.mrb[0].mxu0
      %v616 = vadd.f32 %v552, %v615
      %v617 = vpop.f32.mrb[0].mxu0
      %v618 = vpop.f32.mrb[0].mxu0
      %v619 = vadd.f32 %v552, %v618
      %v620 = vpop.f32.mrb[0].mxu0
      %621 = vdwg.mxu0
      %622 = vst [vmem:[#allocation17] sm:$0xff] %v608
      %623 = vst [vmem:[#allocation17 + $0x8] sm:$0xff] %v611
      %624 = vst [vmem:[#allocation17 + $0x10] sm:$0xff] %v616
      %625 = vst [vmem:[#allocation17 + $0x18] sm:$0xff] %v619
    $region73: #{userconv_forward.1} parent=1 // pred_fallthru
      _
    // Predicated region
    $region74: #{userconv_forward.1} parent=1 // pred_check
      _
    $region75: #{userconv_forward.1} parent=1 // pred_check_branch
      %627 = sbr.rel (0) target = $region77
    $region76: #{userconv_forward.1} parent=1 // pred_region
      %s629 = ssub.s32 512, 512
      %630 = vsyncadd [#allocation5], %s629
      %s631 = sshll.u32 [#allocation17], 4
      %s632 = int_to_ptr.vmem [resolvable:$true] %s631
      %637 = dma.vmem_to_hbm [thread:$0]  %s632, 512, %s8, [#allocation5], 128, 128, 8
    $region77: #{userconv_forward.1} parent=1 // pred_fallthru
      _
    // Predicated region
    $region78: #{userconv_forward.1} parent=1 // pred_check
      _
    $region79: #{userconv_forward.1} parent=1 // pred_check_branch
      %639 = sbr.rel (0) target = $region81
    $region80: #{userconv_forward.1} parent=1 // pred_region
      %640 = dma.done [#allocation5], 512
    $region81: #{userconv_forward.1} parent=1 // pred_fallthru
      _
    %641 = vsyncpa [#allocation4], 1
    %642 = vsyncpa [#allocation7], 1
    %643 = vsyncpa [#allocation10], 1
    %644 = vsyncpa [#allocation13], 1
    %645 = vsyncpa [#allocation16], 1
    %646 = vsyncpa [#allocation5], 1

</llo_original>
